<compile_context>
chip_gen: v5e
topology: v5e:2x2
jax: 0.10.0
libtpu: 0.0.40
codegen_flags: <defaults>
</compile_context>

<pallas_src>
import functools

import jax
import jax.numpy as jnp
from jax.experimental import pallas as pl
from jax.experimental.pallas import tpu as pltpu


_LANE = 128           # lane-dense width (full vreg lanes)
_MAX_ROW_TILE = 4096  # 4096 x 128 x 4B = 2 MiB f32 per input block; with two
                      # inputs double-buffered (~8 MiB) this fits every
                      # generation's scoped-VMEM budget.
                      # TODO(synk): bump to 8192 on v7x (3.2 TB/s HBM) once the
                      # tile is selected per pltpu.get_tpu_info().
_ACC_ROWS = 512       # fixed accumulator height (512 x 128 x 4B = 256 KiB)


def _rmse_partial_kernel(a_ref, b_ref, out_ref, acc_ref, *,
                         rows, row_tile, acc_rows, lane,
                         blocks_per_core, need_mask):
    i = pl.program_id(1)          # reduction ('arbitrary') axis

    @pl.when(i == 0)
    def _():
        acc_ref[...] = jnp.zeros_like(acc_ref)

    d = a_ref[...].astype(jnp.float32) - b_ref[...].astype(jnp.float32)
    sq = d * d

    def accumulate(v):
        if acc_rows == row_tile:
            acc_ref[...] += v
        else:
            # Fixed-size accumulator: fold the row tile in acc_rows-high
            # chunks (static, tile-aligned slices -> no layout copies).
            for j in range(row_tile // acc_rows):
                acc_ref[...] += v[j * acc_rows:(j + 1) * acc_rows, :]

    if need_mask:
        # Global (unclamped) block index; only blocks overrunning the true row
        # count execute the mask path at runtime (pl.when skips the rest).
        g = pl.program_id(0) * blocks_per_core + i
        ragged = (g + 1) * row_tile > rows

        @pl.when(ragged)
        def _():
            valid = rows - g * row_tile          # <= 0 for duplicated blocks
            row_ids = jax.lax.broadcasted_iota(jnp.int32, (row_tile, lane), 0)
            accumulate(jnp.where(row_ids < valid, sq, 0.0))

        @pl.when((g + 1) * row_tile <= rows)
        def _():
            accumulate(sq)
    else:
        accumulate(sq)

    @pl.when(i == pl.num_programs(1) - 1)
    def _():
        out_ref[0, 0] = jnp.sum(acc_ref[...])   # per-core partial sum of squares


def rmse(seq1, seq2):
    assert seq1.shape == seq2.shape, "RMSE expects equal shapes"
    n = int(seq1.size)
    if n == 0:
        return jnp.float32(jnp.nan)   # matches torch.nn.MSELoss on empty input

    a = seq1.reshape(-1)
    b = seq2.reshape(-1)

    rem = n % _LANE
    main = n - rem

    # Ragged (<128 element) tail: tiny, handled with plain jnp in the wrapper
    # so the kernel inputs never need a full-array pad copy.
    tail_sum = jnp.float32(0.0)
    if rem:
        ta = a[main:].astype(jnp.float32)
        tb = b[main:].astype(jnp.float32)
        tail_sum = jnp.sum((ta - tb) * (ta - tb))

    if main == 0:
        return jnp.sqrt(tail_sum / n)

    rows = main // _LANE
    if rem:
        # TODO(synk): the prefix slice materializes one copy of each operand
        # when n % 128 != 0; a fully zero-copy ragged path would need
        # memory_space=pl.ANY + manual make_async_copy chunks.
        a2 = a[:main].reshape(rows, _LANE)
        b2 = b[:main].reshape(rows, _LANE)
    else:
        a2 = a.reshape(rows, _LANE)   # free bitcast for row-major inputs
        b2 = b.reshape(rows, _LANE)

    row_tile = rows if rows <= _MAX_ROW_TILE else _MAX_ROW_TILE
    num_blocks = int(pl.cdiv(rows, row_tile))

    # Leading 'parallel' axis: one partial sum per TensorCore (2 on v7x).
    num_cores = 2 if num_blocks >= 2 else 1
    blocks_per_core = int(pl.cdiv(num_blocks, num_cores))
    total_blocks = num_cores * blocks_per_core
    need_mask = (total_blocks * row_tile) != rows

    acc_rows = _ACC_ROWS if (row_tile % _ACC_ROWS == 0) else row_tile

    kernel = functools.partial(
        _rmse_partial_kernel,
        rows=rows,
        row_tile=row_tile,
        acc_rows=acc_rows,
        lane=_LANE,
        blocks_per_core=blocks_per_core,
        need_mask=need_mask,
    )

    def in_map(c, i):
        # Clamp so duplicated blocks (odd block counts split over 2 cores)
        # stay in bounds; their contribution is zeroed by the ragged mask.
        return (jnp.minimum(c * blocks_per_core + i, num_blocks - 1), 0)

    partials = pl.pallas_call(
        kernel,
        out_shape=jax.ShapeDtypeStruct((num_cores, 1), jnp.float32),
        grid_spec=pltpu.PrefetchScalarGridSpec(
            num_scalar_prefetch=0,
            grid=(num_cores, blocks_per_core),
            in_specs=[
                pl.BlockSpec((row_tile, _LANE), in_map),
                pl.BlockSpec((row_tile, _LANE), in_map),
            ],
            out_specs=pl.BlockSpec(
                (1, 1), lambda c, i: (c, 0), memory_space=pltpu.SMEM
            ),
            scratch_shapes=[pltpu.VMEM((acc_rows, _LANE), jnp.float32)],
        ),
        compiler_params=pltpu.CompilerParams(
            dimension_semantics=("parallel", "arbitrary"),
            vmem_limit_bytes=32 * 1024 * 1024,
        ),
        cost_estimate=pl.CostEstimate(
            flops=3 * n,
            transcendentals=0,
            bytes_accessed=2 * main * seq1.dtype.itemsize,
        ),
    )(a2, b2)

    total = jnp.sum(partials) + tail_sum
    # Finalize (mean + sqrt) in the wrapper: avoids per-core divides and the
    # float32(n) precision concern being baked into the kernel.
    return jnp.sqrt(total / n)


if __name__ == "__main__":
    key = jax.random.PRNGKey(0)
    k1, k2 = jax.random.split(key)
    # Small shapes consistent with a sequence-regression loss: (batch, seq, hidden)
    seq1 = jax.random.normal(k1, (2, 8, 32), dtype=jnp.float32)
    seq2 = jax.random.normal(k2, (2, 8, 32), dtype=jnp.float32)

    result = rmse(seq1, seq2)
    jax.block_until_ready(result)

    # Pure-JAX reference check.
    ref = jnp.sqrt(jnp.mean((seq1 - seq2) ** 2))
    assert jnp.allclose(result, ref, rtol=1e-5, atol=1e-6), (result, ref)

    print("KERNEL_OK")
</pallas_src>

<mosaic_0001>
module attributes {stable_mosaic.version = 11 : i64} {
  func.func @_rmse_partial_kernel(%arg0: i32, %arg1: i32, %arg2: memref<4x128xf32, #tpu.memory_space<vmem>>, %arg3: memref<4x128xf32, #tpu.memory_space<vmem>>, %arg4: memref<1x1xf32, #tpu.memory_space<smem>>, %arg5: memref<4x128xf32, #tpu.memory_space<vmem>>) attributes {dimension_semantics = [#tpu.dimension_semantics<parallel>, #tpu.dimension_semantics<arbitrary>], iteration_bounds = array<i64: 1, 1>, scalar_prefetch = 0 : i64, scratch_operands = 1 : i64, tpu.core_type = #tpu.core_type<tc>, window_params = [{transform_indices = @transform_0, window_bounds = array<i64: 4, 128>}, {transform_indices = @transform_1, window_bounds = array<i64: 4, 128>}, {transform_indices = @transform_2, window_bounds = array<i64: 1, 1>}]} {
    %c0_i32 = arith.constant 0 : i32
    %0 = arith.cmpi eq, %arg1, %c0_i32 : i32
    %1 = arith.extui %0 : i1 to i32
    %c0_i32_0 = arith.constant 0 : i32
    %2 = arith.cmpi ne, %1, %c0_i32_0 : i32
    scf.if %2 {
      %cst = arith.constant 0.000000e+00 : f32
      %13 = vector.broadcast %cst : f32 to vector<4x128xf32>
      %c0_10 = arith.constant 0 : index
      %c0_11 = arith.constant 0 : index
      %14 = vector.load %arg5[%c0_10, %c0_11] : memref<4x128xf32, #tpu.memory_space<vmem>>, vector<4x128xf32>
      tpu.vector_store %arg5[%c0_10, %c0_11], %13 {strides = array<i32>} : memref<4x128xf32, #tpu.memory_space<vmem>>, vector<4x128xf32>,
    } else {
    }
    %c0 = arith.constant 0 : index
    %c0_1 = arith.constant 0 : index
    %3 = vector.load %arg2[%c0, %c0_1] : memref<4x128xf32, #tpu.memory_space<vmem>>, vector<4x128xf32>
    %c0_2 = arith.constant 0 : index
    %c0_3 = arith.constant 0 : index
    %4 = vector.load %arg3[%c0_2, %c0_3] : memref<4x128xf32, #tpu.memory_space<vmem>>, vector<4x128xf32>
    %5 = arith.subf %3, %4 : vector<4x128xf32>
    %6 = arith.mulf %5, %5 : vector<4x128xf32>
    %c0_4 = arith.constant 0 : index
    %c0_5 = arith.constant 0 : index
    %7 = vector.load %arg5[%c0_4, %c0_5] : memref<4x128xf32, #tpu.memory_space<vmem>>, vector<4x128xf32>
    %8 = arith.addf %7, %6 : vector<4x128xf32>
    %c0_6 = arith.constant 0 : index
    %c0_7 = arith.constant 0 : index
    %9 = vector.load %arg5[%c0_6, %c0_7] : memref<4x128xf32, #tpu.memory_space<vmem>>, vector<4x128xf32>
    tpu.vector_store %arg5[%c0_6, %c0_7], %8 {strides = array<i32>} : memref<4x128xf32, #tpu.memory_space<vmem>>, vector<4x128xf32>,
    %c0_i32_8 = arith.constant 0 : i32
    %10 = arith.cmpi eq, %arg1, %c0_i32_8 : i32
    %11 = arith.extui %10 : i1 to i32
    %c0_i32_9 = arith.constant 0 : i32
    %12 = arith.cmpi ne, %11, %c0_i32_9 : i32
    scf.if %12 {
      %c0_10 = arith.constant 0 : index
      %c0_11 = arith.constant 0 : index
      %13 = vector.load %arg5[%c0_10, %c0_11] : memref<4x128xf32, #tpu.memory_space<vmem>>, vector<4x128xf32>
      %14 = vector.shape_cast %13 : vector<4x128xf32> to vector<1x4x128xf32>
      %cst = arith.constant dense<0.000000e+00> : vector<1xf32>
      %15 = vector.multi_reduction <add>, %14, %cst [1, 2] : vector<1x4x128xf32> to vector<1xf32>
      %16 = vector.shape_cast %15 : vector<1xf32> to vector<1x1x1xf32>
      %17 = vector.extract %16[0, 0, 0] : f32 from vector<1x1x1xf32>
      %c0_12 = arith.constant 0 : index
      %c0_13 = arith.constant 0 : index
      %18 = memref.load %arg4[%c0_12, %c0_13] : memref<1x1xf32, #tpu.memory_space<smem>>
      memref.store %17, %arg4[%c0_12, %c0_13] : memref<1x1xf32, #tpu.memory_space<smem>>
    } else {
    }
    return
  }
  func.func @transform_0(%arg0: i32, %arg1: i32) -> (i32, i32) {
    %c1_i32 = arith.constant 1 : i32
    %0 = arith.muli %arg0, %c1_i32 : i32
    %1 = arith.addi %0, %arg1 : i32
    %c0_i32 = arith.constant 0 : i32
    %2 = arith.minsi %1, %c0_i32 : i32
    %c0_i32_0 = arith.constant 0 : i32
    %c0_i32_1 = arith.constant 0 : i32
    return %2, %c0_i32_0 : i32, i32
  }
  func.func @transform_1(%arg0: i32, %arg1: i32) -> (i32, i32) {
    %c1_i32 = arith.constant 1 : i32
    %0 = arith.muli %arg0, %c1_i32 : i32
    %1 = arith.addi %0, %arg1 : i32
    %c0_i32 = arith.constant 0 : i32
    %2 = arith.minsi %1, %c0_i32 : i32
    %c0_i32_0 = arith.constant 0 : i32
    %c0_i32_1 = arith.constant 0 : i32
    return %2, %c0_i32_0 : i32, i32
  }
  func.func @transform_2(%arg0: i32, %arg1: i32) -> (i32, i32) {
    %c0_i32 = arith.constant 0 : i32
    %c0_i32_0 = arith.constant 0 : i32
    return %arg0, %c0_i32 : i32, i32
  }
}

</mosaic_0001>

<llo_original>
// kernel: tpu_custom_call.1
$region0: #{tpu_custom_call.1}
  #allocation0 [shape = 'u32[]', space=smem, size = 0x4, offset = 0x4, fixed_abs, tag = 'smem constant byte address 0x4 - core index']
  #allocation1 [shape = 'u32[72,128]{1,0:T(1,128)}', space=vmem, size = 0x9000, scoped, tag = 'internal scratch']
  #allocation2 [shape = 'f32[4,128]{1,0:T(4,128)}', space=vmem, size = 0x800, scoped, tag = 'scratch operand']
  %s0 = inlined_call_operand.hbm [shape: f32[4,128], index: 0, kind: input, shape index: {}]
  %s1 = inlined_call_operand.hbm [shape: f32[4,128], index: 1, kind: input, shape index: {}]
  %s2 = inlined_call_operand.hbm [shape: f32[1,1], index: 2, kind: output, shape index: {}]
  %s3 = sld [smem:[#allocation0]]
  $region34: #{tpu_custom_call.1} parent=0
    _
  %s5 = ssub.s32 1, %s3
  %s6 = scalar_select 0, %s5, %s3
  $region1: #{tpu_custom_call.1} parent=0
    #allocation3 [shape = 'u8[2048]{0}', space=vmem, size = 0x800, scoped, tag = 'input window, operand 0, single buffered']
    #allocation4 [shape = 's32[1]{0}', space=sflag, size = 0x4, scoped, tag = 'scoped memory for tpu_custom_call.1']
    #allocation5 [shape = 's32[1]{0}', space=sflag, size = 0x4, scoped, tag = 'scoped memory for tpu_custom_call.1']
    #allocation6 [shape = 'u8[2048]{0}', space=vmem, size = 0x800, scoped, tag = 'input window, operand 1, single buffered']
    #allocation7 [shape = 's32[1]{0}', space=sflag, size = 0x4, scoped, tag = 'scoped memory for tpu_custom_call.1']
    #allocation8 [shape = 'u8[512]{0}', space=smem, size = 0x200, scoped, tag = 'output window, operand 0, single buffered']
    %7 = vsyncpa [#allocation4], 0
    %8 = vsyncpa [#allocation7], 0
    %9 = vsyncpa [#allocation5], 0
    // Predicated region
    $region2: #{tpu_custom_call.1} parent=1 // pred_check
      _
    $region3: #{tpu_custom_call.1} parent=1 // pred_check_branch
      %11 = sbr.rel (0) target = $region5
    $region4: #{tpu_custom_call.1} parent=1 // pred_region
      %s12 = sadd.s32 0, 0
      %p13 = scmp.lt.s32.totalorder %s12, 0
      %s14 = scalar_select %p13, %s12, 0
      %16 = vsyncadd [#allocation4], 0
      %s17 = smul.addr %s14, 4
      %s18 = scalar_lea.hbm %s0, %s17
      %s20 = sshll.u32 %s18, 4
      %s21 = int_to_ptr.hbm [resolvable:$true] %s20
      %s22 = sshll.u32 [#allocation3], 4
      %s23 = int_to_ptr.vmem [resolvable:$true] %s22
      %25 = dma.hbm_to_vmem [thread:$0]  %s21, 64, %s23, [#allocation4]
    $region5: #{tpu_custom_call.1} parent=1 // pred_fallthru
      _
    // Predicated region
    $region6: #{tpu_custom_call.1} parent=1 // pred_check
      _
    $region7: #{tpu_custom_call.1} parent=1 // pred_check_branch
      %27 = sbr.rel (0) target = $region9
    $region8: #{tpu_custom_call.1} parent=1 // pred_region
      %s28 = sadd.s32 0, 0
      %p29 = scmp.lt.s32.totalorder %s28, 0
      %s30 = scalar_select %p29, %s28, 0
      %32 = vsyncadd [#allocation7], 0
      %s33 = smul.addr %s30, 4
      %s34 = scalar_lea.hbm %s1, %s33
      %s36 = sshll.u32 %s34, 4
      %s37 = int_to_ptr.hbm [resolvable:$true] %s36
      %s38 = sshll.u32 [#allocation6], 4
      %s39 = int_to_ptr.vmem [resolvable:$true] %s38
      %41 = dma.hbm_to_vmem [thread:$0]  %s37, 64, %s39, [#allocation7]
    $region9: #{tpu_custom_call.1} parent=1 // pred_fallthru
      _
    // Predicated region
    $region10: #{tpu_custom_call.1} parent=1 // pred_check
      _
    $region11: #{tpu_custom_call.1} parent=1 // pred_check_branch
      %43 = sbr.rel (0) target = $region13
    $region12: #{tpu_custom_call.1} parent=1 // pred_region
      %45 = dma.done [#allocation4], 64
    $region13: #{tpu_custom_call.1} parent=1 // pred_fallthru
      _
    // Predicated region
    $region14: #{tpu_custom_call.1} parent=1 // pred_check
      _
    $region15: #{tpu_custom_call.1} parent=1 // pred_check_branch
      %47 = sbr.rel (0) target = $region17
    $region16: #{tpu_custom_call.1} parent=1 // pred_region
      %49 = dma.done [#allocation7], 64
    $region17: #{tpu_custom_call.1} parent=1 // pred_fallthru
      _
    %s50 = sadd.s32 0, 0
    %p51 = scmp.lt.s32.totalorder %s50, 0
    %s52 = scalar_select %p51, %s50, 0
    %s53 = sadd.s32 0, 0
    %p54 = scmp.lt.s32.totalorder %s53, 0
    %s55 = scalar_select %p54, %s53, 0
    %p56 = scmp.eq.s32.totalorder 0, 0
    // Predicated region
    $region18: #{tpu_custom_call.1} parent=1 // pred_check
      %p57 = pneg %p56
    $region19: #{tpu_custom_call.1} parent=1 // pred_check_branch
      %59 = sbr.rel (%p57) target = $region21
    $region20: #{tpu_custom_call.1} parent=1 // pred_region
      %60 = vst [vmem:[#allocation2] sm:$0xf] 0.0
    $region21: #{tpu_custom_call.1} parent=1 // pred_fallthru
      _
    %v61 = vld [vmem:[#allocation3] sm:$0xf]
    %v62 = vld [vmem:[#allocation6] sm:$0xf]
    %v63 = vsub.f32 %v61, %v62
    %v64 = vmul.f32 %v63, %v63
    %v65 = vld [vmem:[#allocation2] sm:$0xf]
    %v66 = vadd.f32 %v65, %v64
    %67 = vst [vmem:[#allocation2] sm:$0xf] %v66
    // Predicated region
    $region22: #{tpu_custom_call.1} parent=1 // pred_check
      %p68 = pneg %p56
    $region23: #{tpu_custom_call.1} parent=1 // pred_check_branch
      %70 = sbr.rel (%p68) target = $region25
    $region24: #{tpu_custom_call.1} parent=1 // pred_region
      %v71 = vld [vmem:[#allocation2] sm:$0xf]
      %vm72 = vcmask 1043456
      %v73 = vsel %vm72, %v71, 0.0
      %74 = vadd.xlane.f32.xlu0 %v73
      %v75 = vpop.xlane.xlu0 %74
      %v76 = vrot.slane %v75, 4
      %v77 = vadd.f32 %v75, %v76
      %v78 = vrot.slane %v77, 2
      %v79 = vadd.f32 %v77, %v78
      %v80 = vrot.slane %v79, 1
      %v81 = vadd.f32 %v79, %v80
      %s82 = vtos %v81
      %s83 = scalar_lea.smem [#allocation8], 0
      %84 = sst [smem:[%s83]] %s82
    $region25: #{tpu_custom_call.1} parent=1 // pred_fallthru
      _
    // Predicated region
    $region26: #{tpu_custom_call.1} parent=1 // pred_check
      _
    $region27: #{tpu_custom_call.1} parent=1 // pred_check_branch
      %86 = sbr.rel (0) target = $region29
    $region28: #{tpu_custom_call.1} parent=1 // pred_region
      %88 = vsyncadd [#allocation5], 0
      %s90 = sshll.u32 %s2, 4
      %s91 = int_to_ptr.hbm [resolvable:$true] %s90
      %93 = dma.smem_to_hbm [#allocation8], 16, %s91, [#allocation5]
    $region29: #{tpu_custom_call.1} parent=1 // pred_fallthru
      _
    // Predicated region
    $region30: #{tpu_custom_call.1} parent=1 // pred_check
      _
    $region31: #{tpu_custom_call.1} parent=1 // pred_check_branch
      %95 = sbr.rel (0) target = $region33
    $region32: #{tpu_custom_call.1} parent=1 // pred_region
      %97 = dma.done [#allocation5], 16
    $region33: #{tpu_custom_call.1} parent=1 // pred_fallthru
      _
    %98 = sfence
    %99 = vsyncpa [#allocation4], 1
    %100 = vsyncpa [#allocation7], 1
    %101 = vsyncpa [#allocation5], 1

</llo_original>
